<compile_context>
chip_gen: v6e
topology: v6e:2x2x1
jax: 0.10.0
libtpu: 0.0.40
codegen_flags: <defaults>
</compile_context>

<pallas_src>
import functools

import jax
import jax.numpy as jnp
from jax.experimental import pallas as pl
from jax.experimental.pallas import tpu as pltpu

LANE = 128        # lane (last-dim) padding granularity
ROW_TILE = 256    # row tile (M) for tiled kernels; also row padding granularity


def _vmem_capacity_bytes():
    """Physical VMEM per core; conservative fallbacks if the query fails."""
    try:
        cap = int(getattr(pltpu.get_tpu_info(), "vmem_capacity_bytes", 0) or 0)
        if cap > 0:
            return cap
    except Exception:
        pass
    try:
        kind = jax.devices()[0].device_kind.lower()
        if "v7" in kind or "7x" in kind:
            return 64 * 1024 * 1024
    except Exception:
        pass
    return 128 * 1024 * 1024


_VMEM_CAP = _vmem_capacity_bytes()
_VMEM_LIMIT = max(32 * 1024 * 1024, _VMEM_CAP - 24 * 1024 * 1024)
# Gridless fused whole-graph path only on big-VMEM single-TC chips (v5e/v6e).
_FUSED_ENABLED = _VMEM_CAP >= 100 * 1024 * 1024
_FUSED_VMEM_BUDGET = _VMEM_LIMIT - 8 * 1024 * 1024


# ------------------------------ small helpers -------------------------------

def _rup(n, m):
    return ((n + m - 1) // m) * m


def _pad2(x, rows, cols, dtype=None):
    if dtype is not None:
        x = x.astype(dtype)
    r, c = x.shape
    return jnp.pad(x, ((0, rows - r), (0, cols - c)))


def _pick_tile(dim, candidates=(2048, 1024, 512, 256)):
    for t in candidates:
        if dim % t == 0:
            return t
    return dim  # dim is always a multiple of ROW_TILE, so not reached


def _cp(*semantics):
    return pltpu.CompilerParams(
        dimension_semantics=semantics if semantics else None,
        vmem_limit_bytes=_VMEM_LIMIT)


# ----------------------------- Pallas kernels ------------------------------

def _matmul_rows_kernel(a_ref, b_ref, o_ref):
    # one ROW_TILE-row tile of A @ full B; bf16 MXU inputs, f32 accumulation
    o_ref[...] = jnp.dot(a_ref[...], b_ref[...],
                         preferred_element_type=jnp.float32).astype(o_ref.dtype)


def _fused_gcn2_kernel(adj_ref, s1_ref, w2_ref, b1_ref, b2_ref, o_ref, *, d_split):
    # whole (padded) graph resident in VMEM; adj is read from HBM exactly once.
    adj = adj_ref[...]                                            # bf16 [Np, Np]
    l1 = jnp.maximum(
        jnp.dot(adj, s1_ref[...], preferred_element_type=jnp.float32)
        + b1_ref[...], 0.0)
    l1_bf = l1.astype(jnp.bfloat16)
    s2 = jnp.dot(l1_bf, w2_ref[...],
                 preferred_element_type=jnp.float32).astype(jnp.bfloat16)
    l2 = jnp.maximum(
        jnp.dot(adj, s2, preferred_element_type=jnp.float32) + b2_ref[...], 0.0)
    o_ref[:, :d_split] = l2.astype(o_ref.dtype)        # wide output = [l2 | l1]
    o_ref[:, d_split:] = l1_bf


def _gcn_l1_s2_kernel(adj_ref, s1_ref, w2_ref, b1_ref, l1_ref, s2_ref, acc_ref,
                      *, tk):
    # l1 = relu(adj @ s1 + b1); s2 = l1 @ W2 fused in the last-k epilogue.
    # s1 / w2 / b1 are fully resident (constant-index blocks); adj is the only
    # streamed operand.
    k = pl.program_id(1)

    @pl.when(k == 0)
    def _():
        acc_ref[...] = jnp.zeros_like(acc_ref)

    start = pl.multiple_of(k * tk, tk)
    acc_ref[...] += jnp.dot(adj_ref[...], s1_ref[pl.ds(start, tk), :],
                            preferred_element_type=jnp.float32)

    @pl.when(k == pl.num_programs(1) - 1)
    def _():
        l1 = jnp.maximum(acc_ref[...] + b1_ref[...], 0.0).astype(jnp.bfloat16)
        l1_ref[...] = l1
        s2_ref[...] = jnp.dot(l1, w2_ref[...],
                              preferred_element_type=jnp.float32
                              ).astype(jnp.bfloat16)


def _gcn_l2_wide_kernel(adj_ref, s2_ref, b2_ref, l1_ref, o_ref, acc_ref,
                        *, tk, d_split):
    # l2 = relu(adj @ s2 + b2); the epilogue also packs the (row-tiled) l1 into
    # the right half of the wide [l2 | l1] output, saving an XLA concat.
    k = pl.program_id(1)

    @pl.when(k == 0)
    def _():
        acc_ref[...] = jnp.zeros_like(acc_ref)

    start = pl.multiple_of(k * tk, tk)
    acc_ref[...] += jnp.dot(adj_ref[...], s2_ref[pl.ds(start, tk), :],
                            preferred_element_type=jnp.float32)

    @pl.when(k == pl.num_programs(1) - 1)
    def _():
        o_ref[:, :d_split] = jnp.maximum(acc_ref[...] + b2_ref[...], 0.0
                                         ).astype(o_ref.dtype)
        o_ref[:, d_split:] = l1_ref[...]


def _agg_norm_kernel(adj_ref, y_ref, o_ref, *, tk, d_split, norm):
    # One wide matmul adj @ [l2 | l1] (shared adj read, full 256-wide MXU fill),
    # accumulating straight into the resident output block; the two row-wise L2
    # norms are the last-k epilogue.
    k = pl.program_id(1)

    @pl.when(k == 0)
    def _():
        o_ref[...] = jnp.zeros_like(o_ref)

    start = pl.multiple_of(k * tk, tk)
    o_ref[...] += jnp.dot(adj_ref[...], y_ref[pl.ds(start, tk), :],
                          preferred_element_type=jnp.float32)

    if norm:
        @pl.when(k == pl.num_programs(1) - 1)
        def _():
            acc = o_ref[...]
            left, right = acc[:, :d_split], acc[:, d_split:]
            # torch parity target: x / (||x||_2 + 1e-9); eps kept on the
            # squared norm so a single rsqrt (EUP) does the job.
            inv_l = jax.lax.rsqrt(jnp.sum(left * left, axis=-1, keepdims=True)
                                  + 1e-18)
            inv_r = jax.lax.rsqrt(jnp.sum(right * right, axis=-1, keepdims=True)
                                  + 1e-18)
            o_ref[:, :d_split] = left * inv_l
            o_ref[:, d_split:] = right * inv_r


def _norm_wide_kernel(y_ref, o_ref, *, d_split, norm):
    # row-wise L2 norm of both halves of a [out | out_one] wide block
    y = y_ref[...].astype(jnp.float32)
    if norm:
        left, right = y[:, :d_split], y[:, d_split:]
        inv_l = jax.lax.rsqrt(jnp.sum(left * left, axis=-1, keepdims=True) + 1e-18)
        inv_r = jax.lax.rsqrt(jnp.sum(right * right, axis=-1, keepdims=True) + 1e-18)
        o_ref[:, :d_split] = left * inv_l
        o_ref[:, d_split:] = right * inv_r
    else:
        o_ref[...] = y


# ------------------------------ wrappers ------------------------------------

def matmul_rows(a_p, b_p, out_dtype=jnp.bfloat16):
    """a_p @ b_p, ROW_TILE-row tiles of a, full (small) b resident. Pre-padded bf16."""
    m, k = a_p.shape
    n = b_p.shape[1]
    return pl.pallas_call(
        _matmul_rows_kernel,
        out_shape=jax.ShapeDtypeStruct((m, n), out_dtype),
        grid=(m // ROW_TILE,),
        in_specs=[pl.BlockSpec((ROW_TILE, k), lambda i: (i, 0)),
                  pl.BlockSpec((k, n), lambda i: (0, 0))],
        out_specs=pl.BlockSpec((ROW_TILE, n), lambda i: (i, 0)),
        compiler_params=_cp("parallel"),
    )(a_p, b_p)


def fused_gcn2(adj_p, s1_p, w2_p, b1_p, b2_p):
    """Both GCN layers in one gridless call (graph fits VMEM). bf16 [l2 | l1]."""
    n_p = adj_p.shape[0]
    d1p = s1_p.shape[1]
    d2p = w2_p.shape[1]
    return pl.pallas_call(
        functools.partial(_fused_gcn2_kernel, d_split=d2p),
        out_shape=jax.ShapeDtypeStruct((n_p, d2p + d1p), jnp.bfloat16),
        compiler_params=_cp(),
    )(adj_p, s1_p, w2_p, b1_p, b2_p)


def gcn_two_layers_tiled(adj_p, s1_p, w2_p, b1_p, b2_p):
    """Two GCN layers, row x K tiled (VMEM-bounded, megacore-friendly).

    NOTE: the dense activations (N x 128 bf16) are kept fully resident in VMEM;
    only the adjacency is streamed.  Returns bf16 [l2 | l1]."""
    n_p = adj_p.shape[0]
    d1p = s1_p.shape[1]
    d2p = w2_p.shape[1]
    tk = _pick_tile(n_p)
    grid = (n_p // ROW_TILE, n_p // tk)

    # layer 1 (+ fused W2 projection in the epilogue)
    l1_p, s2_p = pl.pallas_call(
        functools.partial(_gcn_l1_s2_kernel, tk=tk),
        out_shape=(jax.ShapeDtypeStruct((n_p, d1p), jnp.bfloat16),
                   jax.ShapeDtypeStruct((n_p, d2p), jnp.bfloat16)),
        grid=grid,
        in_specs=[pl.BlockSpec((ROW_TILE, tk), lambda i, k: (i, k)),
                  pl.BlockSpec((n_p, d1p), lambda i, k: (0, 0)),    # resident
                  pl.BlockSpec((d1p, d2p), lambda i, k: (0, 0)),    # resident
                  pl.BlockSpec((1, d1p), lambda i, k: (0, 0))],
        out_specs=(pl.BlockSpec((ROW_TILE, d1p), lambda i, k: (i, 0)),
                   pl.BlockSpec((ROW_TILE, d2p), lambda i, k: (i, 0))),
        scratch_shapes=[pltpu.VMEM((ROW_TILE, d1p), jnp.float32)],
        compiler_params=_cp("parallel", "arbitrary"),
    )(adj_p, s1_p, w2_p, b1_p)

    # layer 2; epilogue packs l1 into the right half of the wide output
    wide_p = pl.pallas_call(
        functools.partial(_gcn_l2_wide_kernel, tk=tk, d_split=d2p),
        out_shape=jax.ShapeDtypeStruct((n_p, d2p + d1p), jnp.bfloat16),
        grid=grid,
        in_specs=[pl.BlockSpec((ROW_TILE, tk), lambda i, k: (i, k)),
                  pl.BlockSpec((n_p, d2p), lambda i, k: (0, 0)),    # resident
                  pl.BlockSpec((1, d2p), lambda i, k: (0, 0)),
                  pl.BlockSpec((ROW_TILE, d1p), lambda i, k: (i, 0))],
        out_specs=pl.BlockSpec((ROW_TILE, d2p + d1p), lambda i, k: (i, 0)),
        scratch_shapes=[pltpu.VMEM((ROW_TILE, d2p), jnp.float32)],
        compiler_params=_cp("parallel", "arbitrary"),
    )(adj_p, s2_p, b2_p, l1_p)
    return wide_p


def aggregate_and_norm(adj_p, y_wide_p, d_split, *, norm):
    """adj_p @ [l2 | l1] with both row-wise L2 norms fused in the epilogue."""
    m_p, k_p = adj_p.shape
    dwp = y_wide_p.shape[1]
    tk = _pick_tile(k_p)
    return pl.pallas_call(
        functools.partial(_agg_norm_kernel, tk=tk, d_split=d_split, norm=norm),
        out_shape=jax.ShapeDtypeStruct((m_p, dwp), jnp.float32),
        grid=(m_p // ROW_TILE, k_p // tk),
        in_specs=[pl.BlockSpec((ROW_TILE, tk), lambda i, k: (i, k)),
                  pl.BlockSpec((k_p, dwp), lambda i, k: (0, 0))],    # resident
        out_specs=pl.BlockSpec((ROW_TILE, dwp), lambda i, k: (i, 0)),
        compiler_params=_cp("parallel", "arbitrary"),
    )(adj_p, y_wide_p)


def norm_wide(y_wide_p, d_split, *, norm):
    m_p, dwp = y_wide_p.shape
    return pl.pallas_call(
        functools.partial(_norm_wide_kernel, d_split=d_split, norm=norm),
        out_shape=jax.ShapeDtypeStruct((m_p, dwp), jnp.float32),
        grid=(m_p // ROW_TILE,),
        in_specs=[pl.BlockSpec((ROW_TILE, dwp), lambda i: (i, 0))],
        out_specs=pl.BlockSpec((ROW_TILE, dwp), lambda i: (i, 0)),
        compiler_params=_cp("parallel"),
    )(y_wide_p)


# ------------------------------ HEGCL forward -------------------------------

def gcn_stack(adj_m, x, w1, b1, w2, b2, *, identity, force_tiled=False):
    """l1 = relu(adj @ (xW1 or x) + b1); l2 = relu(adj @ (l1 W2) + b2).

    Returns (wide_p, d_split, d2, d1) with wide_p = bf16 padded [l2 | l1]."""
    n = adj_m.shape[0]
    n_p = _rup(n, ROW_TILE)
    d1 = x.shape[1] if identity else w1.shape[1]
    d2 = w2.shape[1]
    d1p, d2p = _rup(d1, LANE), _rup(d2, LANE)

    adj_p = _pad2(adj_m, n_p, n_p, jnp.bfloat16)
    if identity:
        s1_p = _pad2(x, n_p, d1p, jnp.bfloat16)
    else:
        # precompute xW1 once (never per row-tile)
        x_p = _pad2(x, n_p, _rup(x.shape[1], LANE), jnp.bfloat16)
        w1_p = _pad2(w1, _rup(w1.shape[0], LANE), d1p, jnp.bfloat16)
        s1_p = matmul_rows(x_p, w1_p)
    w2_p = _pad2(w2, d1p, d2p, jnp.bfloat16)
    b1_p = _pad2(b1.reshape(1, -1).astype(jnp.float32), 1, d1p)
    b2_p = _pad2(b2.reshape(1, -1).astype(jnp.float32), 1, d2p)

    # Fused-path footprint: operands + wide bf16 output + in-kernel f32
    # temporaries (l1, s2/l2), plus compiler-scratch headroom. No pipeline
    # double-buffer factor: grid=() has no pipelining.
    fused_bytes = (adj_p.size * 2 + s1_p.size * 2 + w2_p.size * 2
                   + n_p * (d1p + d2p) * 2
                   + n_p * d1p * 4 + 2 * n_p * d2p * 4
                   + (8 << 20))
    if _FUSED_ENABLED and not force_tiled and fused_bytes <= _FUSED_VMEM_BUDGET:
        wide_p = fused_gcn2(adj_p, s1_p, w2_p, b1_p, b2_p)
    else:
        wide_p = gcn_two_layers_tiled(adj_p, s1_p, w2_p, b1_p, b2_p)
    return wide_p, d2p, d2, d1


def hegcl_forward(adj, feature, weights, *, type_num, concat_word_emb=False,
                  norm=True, force_tiled=False):
    """Mirrors HEGCL.forward (eval mode: dropout == identity)."""
    n_docs = adj["11"].shape[0]
    outs = []   # per type: (wide_p bf16 [out | out_one], d_split, true_d, true_d_one)
    for i in range(type_num - 1):
        key = str(i + 1) + str(i + 1)
        w1, b1, w2, b2 = weights[i]
        identity = (i == 0) or (i == 1 and concat_word_emb)
        wide_p, d_split, d2, d1 = gcn_stack(
            adj[key], feature[str(i + 1)], w1, b1, w2, b2,
            identity=identity, force_tiled=force_tiled)
        if i == 1 and concat_word_emb:
            n = adj[key].shape[0]
            we = feature["word_emb"].astype(jnp.float32)
            dw = we.shape[1]
            left = jnp.concatenate(
                [wide_p[:n, :d2].astype(jnp.float32), we], axis=-1)
            right = jnp.concatenate(
                [wide_p[:n, d_split:d_split + d1].astype(jnp.float32), we], axis=-1)
            dl, dr = d2 + dw, d1 + dw
            dlp, drp = _rup(dl, LANE), _rup(dr, LANE)
            wide = jnp.concatenate([_pad2(left, n, dlp), _pad2(right, n, drp)],
                                   axis=-1)
            wide_p = _pad2(wide, _rup(n, ROW_TILE), dlp + drp, jnp.bfloat16)
            outs.append((wide_p, dlp, dl, dr))
        else:
            outs.append((wide_p, d_split, d2, d1))

    # aggregate(): type 0 passes through (normalized only); every other type j
    # is projected into doc space with adj['1'+str(j+1)]; norm fused in-kernel.
    refined, refined_svd = [], []
    wide0, split0, d0, d01 = outs[0]
    r0 = norm_wide(wide0, split0, norm=norm)
    refined.append(r0[:n_docs, :d0])
    refined_svd.append(r0[:n_docs, split0:split0 + d01])

    for j in range(1, type_num - 1):
        a = adj["1" + str(j + 1)]
        widej, splitj, dj, dj1 = outs[j]
        a_p = _pad2(a, _rup(a.shape[0], ROW_TILE), _rup(a.shape[1], ROW_TILE),
                    jnp.bfloat16)
        rj = aggregate_and_norm(a_p, widej, splitj, norm=norm)
        refined.append(rj[:n_docs, :dj])
        refined_svd.append(rj[:n_docs, splitj:splitj + dj1])

    doc_features = jnp.concatenate(refined, axis=-1)
    doc_features_svd = jnp.concatenate(refined_svd, axis=-1)
    return doc_features, doc_features_svd


# ----------------------------- pure-JAX reference ---------------------------

def hegcl_reference(adj, feature, weights, *, type_num, norm=True):
    outs, outs1 = [], []
    for i in range(type_num - 1):
        w1, b1, w2, b2 = weights[i]
        a = adj[str(i + 1) + str(i + 1)]
        x = feature[str(i + 1)]
        s1 = x if i == 0 else x @ w1
        l1 = jax.nn.relu(a @ s1 + b1)
        l2 = jax.nn.relu(a @ (l1 @ w2) + b2)
        outs.append(l2)
        outs1.append(l1)
    refined, refined_svd = [], []
    for j in range(type_num - 1):
        if j == 0:
            r, r1 = outs[0], outs1[0]
        else:
            a = adj["1" + str(j + 1)]
            r, r1 = a @ outs[j], a @ outs1[j]
        if norm:
            r = r / (jnp.linalg.norm(r, axis=-1, keepdims=True) + 1e-9)
            r1 = r1 / (jnp.linalg.norm(r1, axis=-1, keepdims=True) + 1e-9)
        refined.append(r)
        refined_svd.append(r1)
    return jnp.concatenate(refined, -1), jnp.concatenate(refined_svd, -1)


# --------------------------------- driver -----------------------------------

if __name__ == "__main__":
    key = jax.random.PRNGKey(0)
    ks = list(jax.random.split(key, 16))

    # 3 node types -> type_num = 3 -> two GCN branches (types "1" and "2").
    TYPE_NUM = 3
    N1, N2 = 16, 24                       # docs / type-2 nodes
    IN1, IN2 = 32, 48                     # in_features_dim[1], [2]
    OUT1, OUT2 = 32, 32                   # out_features_dim[1], [2]

    adj = {
        "11": jax.random.uniform(ks[0], (N1, N1), jnp.float32),
        "22": jax.random.uniform(ks[1], (N2, N2), jnp.float32),
        "12": jax.random.uniform(ks[2], (N1, N2), jnp.float32),
    }
    feature = {
        "1": jax.random.normal(ks[3], (N1, IN1), jnp.float32),
        "2": jax.random.normal(ks[4], (N2, IN2), jnp.float32),
    }

    def init_linear(k, din, dout):
        kw, kb = jax.random.split(k)
        return (0.1 * jax.random.normal(kw, (din, dout), jnp.float32),
                0.01 * jax.random.normal(kb, (dout,), jnp.float32))

    # weights[i] = (W1, b1, W2, b2) for GCNs[i] / GCNs_2[i]
    w1a, b1a = init_linear(ks[5], IN1, OUT1)   # type 1 (identity path ignores W1)
    w2a, b2a = init_linear(ks[6], OUT1, OUT1)
    w1b, b1b = init_linear(ks[7], IN2, OUT2)
    w2b, b2b = init_linear(ks[8], OUT2, OUT2)
    weights = [(w1a, b1a, w2a, b2a), (w1b, b1b, w2b, b2b)]

    ref, ref_svd = hegcl_reference(adj, feature, weights, type_num=TYPE_NUM)

    # Exercise both the fused (if enabled on this chip) and the tiled path.
    for force_tiled in (False, True):
        doc_features, doc_features_svd = hegcl_forward(
            adj, feature, weights, type_num=TYPE_NUM,
            concat_word_emb=False, force_tiled=force_tiled)
        jax.block_until_ready((doc_features, doc_features_svd))
        assert doc_features.shape == (N1, OUT1 + OUT2)
        assert doc_features_svd.shape == (N1, IN1 + OUT2)
        # bf16 MXU inputs + rsqrt norm -> validate against f32 ref with tolerance
        assert jnp.allclose(doc_features, ref, atol=6e-2, rtol=6e-2), \
            float(jnp.max(jnp.abs(doc_features - ref)))
        assert jnp.allclose(doc_features_svd, ref_svd, atol=6e-2, rtol=6e-2), \
            float(jnp.max(jnp.abs(doc_features_svd - ref_svd)))

    print("KERNEL_OK")
</pallas_src>

<mosaic_0001>
module attributes {stable_mosaic.version = 11 : i64} {
  func.func @_fused_gcn2_kernel(%arg0: memref<256x256xbf16, #tpu.memory_space<vmem>>, %arg1: memref<256x128xbf16, #tpu.memory_space<vmem>>, %arg2: memref<128x128xbf16, #tpu.memory_space<vmem>>, %arg3: memref<1x128xf32, #tpu.memory_space<vmem>>, %arg4: memref<1x128xf32, #tpu.memory_space<vmem>>, %arg5: memref<256x256xbf16, #tpu.memory_space<vmem>>) attributes {dimension_semantics = [], scalar_prefetch = 0 : i64, scratch_operands = 0 : i64, tpu.core_type = #tpu.core_type<tc>} {
    %c0 = arith.constant 0 : index
    %c0_0 = arith.constant 0 : index
    %0 = vector.load %arg0[%c0, %c0_0] : memref<256x256xbf16, #tpu.memory_space<vmem>>, vector<256x256xbf16>
    %c0_1 = arith.constant 0 : index
    %c0_2 = arith.constant 0 : index
    %1 = vector.load %arg1[%c0_1, %c0_2] : memref<256x128xbf16, #tpu.memory_space<vmem>>, vector<256x128xbf16>
    %cst = arith.constant dense<0.000000e+00> : vector<256x128xf32>
    %2 = tpu.matmul %0, %1, %cst {dimension_numbers = #tpu.dot_dimension_numbers<[1], [0], [0], [1], [0, 0, 1, 1], [], []>} : vector<256x256xbf16>, vector<256x128xbf16>, vector<256x128xf32> -> vector<256x128xf32>
    %c0_3 = arith.constant 0 : index
    %c0_4 = arith.constant 0 : index
    %3 = vector.load %arg3[%c0_3, %c0_4] : memref<1x128xf32, #tpu.memory_space<vmem>>, vector<1x128xf32>
    %4 = vector.broadcast %3 : vector<1x128xf32> to vector<256x128xf32>
    %5 = arith.addf %2, %4 : vector<256x128xf32>
    %cst_5 = arith.constant 0.000000e+00 : f32
    %6 = vector.broadcast %cst_5 : f32 to vector<256x128xf32>
    %7 = arith.maximumf %5, %6 : vector<256x128xf32>
    %8 = arith.truncf %7 : vector<256x128xf32> to vector<256x128xbf16>
    %c0_6 = arith.constant 0 : index
    %c0_7 = arith.constant 0 : index
    %9 = vector.load %arg2[%c0_6, %c0_7] : memref<128x128xbf16, #tpu.memory_space<vmem>>, vector<128x128xbf16>
    %cst_8 = arith.constant dense<0.000000e+00> : vector<256x128xf32>
    %10 = tpu.matmul %8, %9, %cst_8 {dimension_numbers = #tpu.dot_dimension_numbers<[1], [0], [0], [1], [0, 0, 1, 1], [], []>} : vector<256x128xbf16>, vector<128x128xbf16>, vector<256x128xf32> -> vector<256x128xf32>
    %11 = arith.truncf %10 : vector<256x128xf32> to vector<256x128xbf16>
    %cst_9 = arith.constant dense<0.000000e+00> : vector<256x128xf32>
    %12 = tpu.matmul %0, %11, %cst_9 {dimension_numbers = #tpu.dot_dimension_numbers<[1], [0], [0], [1], [0, 0, 1, 1], [], []>} : vector<256x256xbf16>, vector<256x128xbf16>, vector<256x128xf32> -> vector<256x128xf32>
    %c0_10 = arith.constant 0 : index
    %c0_11 = arith.constant 0 : index
    %13 = vector.load %arg4[%c0_10, %c0_11] : memref<1x128xf32, #tpu.memory_space<vmem>>, vector<1x128xf32>
    %14 = vector.broadcast %13 : vector<1x128xf32> to vector<256x128xf32>
    %15 = arith.addf %12, %14 : vector<256x128xf32>
    %cst_12 = arith.constant 0.000000e+00 : f32
    %16 = vector.broadcast %cst_12 : f32 to vector<256x128xf32>
    %17 = arith.maximumf %15, %16 : vector<256x128xf32>
    %18 = arith.truncf %17 : vector<256x128xf32> to vector<256x128xbf16>
    %c0_13 = arith.constant 0 : index
    %c0_14 = arith.constant 0 : index
    %19 = vector.load %arg5[%c0_13, %c0_14] : memref<256x256xbf16, #tpu.memory_space<vmem>>, vector<256x128xbf16>
    tpu.vector_store %arg5[%c0_13, %c0_14], %18 {strides = array<i32>} : memref<256x256xbf16, #tpu.memory_space<vmem>>, vector<256x128xbf16>,
    %c0_15 = arith.constant 0 : index
    %c128 = arith.constant 128 : index
    %20 = vector.load %arg5[%c0_15, %c128] : memref<256x256xbf16, #tpu.memory_space<vmem>>, vector<256x128xbf16>
    tpu.vector_store %arg5[%c0_15, %c128], %8 {strides = array<i32>} : memref<256x256xbf16, #tpu.memory_space<vmem>>, vector<256x128xbf16>,
    return
  }
}

</mosaic_0001>

<llo_original>
// kernel: tpu_custom_call.1
$region0: #{tpu_custom_call.1}
  #allocation0 [shape = 'u32[]', space=smem, size = 0x4, offset = 0x4, fixed_abs, tag = 'smem constant byte address 0x4 - core index']
  #allocation1 [shape = 'u32[144,128]{1,0:T(1,128)}', space=vmem, size = 0x12000, scoped, tag = 'internal scratch']
  %s0 = inlined_call_operand.hbm [shape: bf16[256,256], index: 0, kind: input, shape index: {}]
  %s1 = inlined_call_operand.hbm [shape: bf16[256,128], index: 1, kind: input, shape index: {}]
  %s2 = inlined_call_operand.hbm [shape: bf16[128,128], index: 2, kind: input, shape index: {}]
  %s3 = inlined_call_operand.vmem [shape: f32[1,128], index: 3, kind: input, shape index: {}]
  %s4 = inlined_call_operand.vmem [shape: f32[1,128], index: 4, kind: input, shape index: {}]
  %s5 = inlined_call_operand.hbm [shape: bf16[256,256], index: 5, kind: output, shape index: {}]
  %s6 = sld [smem:[#allocation0]]
  $region42: #{tpu_custom_call.1} parent=0
    _
  %s8 = ssub.s32 1, %s6
  %s9 = scalar_select 0, %s8, %s6
  $region1: #{tpu_custom_call.1} parent=0
    #allocation2 [shape = 'u8[131072]{0}', space=vmem, size = 0x20000, scoped, tag = 'input window, operand 0, single buffered']
    #allocation3 [shape = 's32[1]{0}', space=sflag, size = 0x4, scoped, tag = 'scoped memory for tpu_custom_call.1']
    #allocation4 [shape = 's32[1]{0}', space=sflag, size = 0x4, scoped, tag = 'scoped memory for tpu_custom_call.1']
    #allocation5 [shape = 'u8[65536]{0}', space=vmem, size = 0x10000, scoped, tag = 'input window, operand 1, single buffered']
    #allocation6 [shape = 's32[1]{0}', space=sflag, size = 0x4, scoped, tag = 'scoped memory for tpu_custom_call.1']
    #allocation7 [shape = 'u8[32768]{0}', space=vmem, size = 0x8000, scoped, tag = 'input window, operand 2, single buffered']
    #allocation8 [shape = 'u8[131072]{0}', space=vmem, size = 0x20000, scoped, tag = 'output window, operand 0, single buffered']
    %10 = vsyncpa [#allocation3], 0
    %11 = vsyncpa [#allocation6], 0
    %12 = vsyncpa [#allocation4], 0
    // Predicated region
    $region2: #{tpu_custom_call.1} parent=1 // pred_check
      _
    $region3: #{tpu_custom_call.1} parent=1 // pred_check_branch
      %14 = sbr.rel (0) target = $region5
    $region4: #{tpu_custom_call.1} parent=1 // pred_region
      %s16 = ssub.s32 4096, 4096
      %17 = vsyncadd [#allocation3], %s16
      %s18 = sshll.u32 [#allocation2], 4
      %s19 = int_to_ptr.vmem [resolvable:$true] %s18
      %24 = dma.hbm_to_vmem [thread:$0]  %s0, 4096, %s19, [#allocation3], 128, 128, 8
    $region5: #{tpu_custom_call.1} parent=1 // pred_fallthru
      _
    // Predicated region
    $region6: #{tpu_custom_call.1} parent=1 // pred_check
      _
    $region7: #{tpu_custom_call.1} parent=1 // pred_check_branch
      %26 = sbr.rel (0) target = $region9
    $region8: #{tpu_custom_call.1} parent=1 // pred_region
      %s28 = ssub.s32 2048, 2048
      %29 = vsyncadd [#allocation6], %s28
      %s30 = sshll.u32 [#allocation5], 4
      %s31 = int_to_ptr.vmem [resolvable:$true] %s30
      %36 = dma.hbm_to_vmem [thread:$0]  %s1, 2048, %s31, [#allocation6], 64, 64, 4
    $region9: #{tpu_custom_call.1} parent=1 // pred_fallthru
      _
    // Predicated region
    $region10: #{tpu_custom_call.1} parent=1 // pred_check
      _
    $region11: #{tpu_custom_call.1} parent=1 // pred_check_branch
      %38 = sbr.rel (0) target = $region13
    $region12: #{tpu_custom_call.1} parent=1 // pred_region
      %s40 = ssub.s32 1024, 1024
      %41 = vsyncadd [#allocation6], %s40
      %s42 = sshll.u32 [#allocation7], 4
      %s43 = int_to_ptr.vmem [resolvable:$true] %s42
      %48 = dma.hbm_to_vmem [thread:$0]  %s2, 1024, %s43, [#allocation6], 64, 64, 4
    $region13: #{tpu_custom_call.1} parent=1 // pred_fallthru
      _
    // Predicated region
    $region14: #{tpu_custom_call.1} parent=1 // pred_check
      _
    $region15: #{tpu_custom_call.1} parent=1 // pred_check_branch
      %50 = sbr.rel (0) target = $region17
    $region16: #{tpu_custom_call.1} parent=1 // pred_region
      _
    $region17: #{tpu_custom_call.1} parent=1 // pred_fallthru
      _
    // Predicated region
    $region18: #{tpu_custom_call.1} parent=1 // pred_check
      _
    $region19: #{tpu_custom_call.1} parent=1 // pred_check_branch
      %52 = sbr.rel (0) target = $region21
    $region20: #{tpu_custom_call.1} parent=1 // pred_region
      _
    $region21: #{tpu_custom_call.1} parent=1 // pred_fallthru
      _
    // Predicated region
    $region22: #{tpu_custom_call.1} parent=1 // pred_check
      _
    $region23: #{tpu_custom_call.1} parent=1 // pred_check_branch
      %54 = sbr.rel (0) target = $region25
    $region24: #{tpu_custom_call.1} parent=1 // pred_region
      %55 = dma.done [#allocation3], 4096
    $region25: #{tpu_custom_call.1} parent=1 // pred_fallthru
      _
    // Predicated region
    $region26: #{tpu_custom_call.1} parent=1 // pred_check
      _
    $region27: #{tpu_custom_call.1} parent=1 // pred_check_branch
      %57 = sbr.rel (0) target = $region29
    $region28: #{tpu_custom_call.1} parent=1 // pred_region
      %58 = dma.done [#allocation6], 2048
    $region29: #{tpu_custom_call.1} parent=1 // pred_fallthru
      _
    // Predicated region
    $region30: #{tpu_custom_call.1} parent=1 // pred_check
      _
    $region31: #{tpu_custom_call.1} parent=1 // pred_check_branch
      %60 = sbr.rel (0) target = $region33
    $region32: #{tpu_custom_call.1} parent=1 // pred_region
      %61 = dma.done [#allocation6], 1024
    $region33: #{tpu_custom_call.1} parent=1 // pred_fallthru
      _
    %v63 = vld [vmem:[#allocation2] sm:$0xff]
    %v64 = vld [vmem:[#allocation2 + $0x8] sm:$0xff]
    %v65 = vld [vmem:[#allocation2 + $0x10] sm:$0xff]
    %v66 = vld [vmem:[#allocation2 + $0x18] sm:$0xff]
    %v67 = vld [vmem:[#allocation2 + $0x20] sm:$0xff]
    %v68 = vld [vmem:[#allocation2 + $0x28] sm:$0xff]
    %v69 = vld [vmem:[#allocation2 + $0x30] sm:$0xff]
    %v70 = vld [vmem:[#allocation2 + $0x38] sm:$0xff]
    %v71 = vld [vmem:[#allocation2 + $0x40] sm:$0xff]
    %v72 = vld [vmem:[#allocation2 + $0x48] sm:$0xff]
    %v73 = vld [vmem:[#allocation2 + $0x50] sm:$0xff]
    %v74 = vld [vmem:[#allocation2 + $0x58] sm:$0xff]
    %v75 = vld [vmem:[#allocation2 + $0x60] sm:$0xff]
    %v76 = vld [vmem:[#allocation2 + $0x68] sm:$0xff]
    %v77 = vld [vmem:[#allocation2 + $0x70] sm:$0xff]
    %v78 = vld [vmem:[#allocation2 + $0x78] sm:$0xff]
    %v79 = vld [vmem:[#allocation2 + $0x80] sm:$0xff]
    %v80 = vld [vmem:[#allocation2 + $0x88] sm:$0xff]
    %v81 = vld [vmem:[#allocation2 + $0x90] sm:$0xff]
    %v82 = vld [vmem:[#allocation2 + $0x98] sm:$0xff]
    %v83 = vld [vmem:[#allocation2 + $0xa0] sm:$0xff]
    %v84 = vld [vmem:[#allocation2 + $0xa8] sm:$0xff]
    %v85 = vld [vmem:[#allocation2 + $0xb0] sm:$0xff]
    %v86 = vld [vmem:[#allocation2 + $0xb8] sm:$0xff]
    %v87 = vld [vmem:[#allocation2 + $0xc0] sm:$0xff]
    %v88 = vld [vmem:[#allocation2 + $0xc8] sm:$0xff]
    %v89 = vld [vmem:[#allocation2 + $0xd0] sm:$0xff]
    %v90 = vld [vmem:[#allocation2 + $0xd8] sm:$0xff]
    %v91 = vld [vmem:[#allocation2 + $0xe0] sm:$0xff]
    %v92 = vld [vmem:[#allocation2 + $0xe8] sm:$0xff]
    %v93 = vld [vmem:[#allocation2 + $0xf0] sm:$0xff]
    %v94 = vld [vmem:[#allocation2 + $0xf8] sm:$0xff]
    %v95 = vld [vmem:[#allocation5] sm:$0xf]
    %v96 = vld [vmem:[#allocation5 + $0x4] sm:$0xf]
    %v97 = vld [vmem:[#allocation5 + $0x8] sm:$0xf]
    %v98 = vld [vmem:[#allocation5 + $0xc] sm:$0xf]
    %v99 = vld [vmem:[#allocation5 + $0x10] sm:$0xf]
    %v100 = vld [vmem:[#allocation5 + $0x14] sm:$0xf]
    %v101 = vld [vmem:[#allocation5 + $0x18] sm:$0xf]
    %v102 = vld [vmem:[#allocation5 + $0x1c] sm:$0xf]
    %v103 = vld [vmem:[#allocation5 + $0x20] sm:$0xf]
    %v104 = vld [vmem:[#allocation5 + $0x24] sm:$0xf]
    %v105 = vld [vmem:[#allocation5 + $0x28] sm:$0xf]
    %v106 = vld [vmem:[#allocation5 + $0x2c] sm:$0xf]
    %v107 = vld [vmem:[#allocation5 + $0x30] sm:$0xf]
    %v108 = vld [vmem:[#allocation5 + $0x34] sm:$0xf]
    %v109 = vld [vmem:[#allocation5 + $0x38] sm:$0xf]
    %v110 = vld [vmem:[#allocation5 + $0x3c] sm:$0xf]
    %v111 = vld [vmem:[#allocation5 + $0x40] sm:$0xf]
    %v112 = vld [vmem:[#allocation5 + $0x44] sm:$0xf]
    %v113 = vld [vmem:[#allocation5 + $0x48] sm:$0xf]
    %v114 = vld [vmem:[#allocation5 + $0x4c] sm:$0xf]
    %v115 = vld [vmem:[#allocation5 + $0x50] sm:$0xf]
    %v116 = vld [vmem:[#allocation5 + $0x54] sm:$0xf]
    %v117 = vld [vmem:[#allocation5 + $0x58] sm:$0xf]
    %v118 = vld [vmem:[#allocation5 + $0x5c] sm:$0xf]
    %v119 = vld [vmem:[#allocation5 + $0x60] sm:$0xf]
    %v120 = vld [vmem:[#allocation5 + $0x64] sm:$0xf]
    %v121 = vld [vmem:[#allocation5 + $0x68] sm:$0xf]
    %v122 = vld [vmem:[#allocation5 + $0x6c] sm:$0xf]
    %v123 = vld [vmem:[#allocation5 + $0x70] sm:$0xf]
    %v124 = vld [vmem:[#allocation5 + $0x74] sm:$0xf]
    %v125 = vld [vmem:[#allocation5 + $0x78] sm:$0xf]
    %v126 = vld [vmem:[#allocation5 + $0x7c] sm:$0xf]
    %v127 = vld [vmem:[%s3] sm:$0x1]
    %v129 = vlaneseq
    %v130 = vshrl.u32 %v129, 7
    %v131 = vsub.s32 0, %v130
    %v132 = vrot.slane %v127, %v131
    %v166 = vunpack.c.l.b16 %v63
    %v167 = vunpack.c.h.b16 %v63
    %v168 = vunpack.c.l.b16 %v64
    %v169 = vunpack.c.h.b16 %v64
    %v170 = vunpack.c.l.b16 %v65
    %v171 = vunpack.c.h.b16 %v65
    %v172 = vunpack.c.l.b16 %v66
    %v173 = vunpack.c.h.b16 %v66
    %v174 = vunpack.c.l.b16 %v67
    %v175 = vunpack.c.h.b16 %v67
    %v176 = vunpack.c.l.b16 %v68
    %v177 = vunpack.c.h.b16 %v68
    %v178 = vunpack.c.l.b16 %v69
    %v179 = vunpack.c.h.b16 %v69
    %v180 = vunpack.c.l.b16 %v70
    %v181 = vunpack.c.h.b16 %v70
    %v182 = vunpack.c.l.b16 %v71
    %v183 = vunpack.c.h.b16 %v71
    %v184 = vunpack.c.l.b16 %v72
    %v185 = vunpack.c.h.b16 %v72
    %v186 = vunpack.c.l.b16 %v73
    %v187 = vunpack.c.h.b16 %v73
    %v188 = vunpack.c.l.b16 %v74
    %v189 = vunpack.c.h.b16 %v74
    %v190 = vunpack.c.l.b16 %v75
    %v191 = vunpack.c.h.b16 %v75
    %v192 = vunpack.c.l.b16 %v76
    %v193 = vunpack.c.h.b16 %v76
    %v194 = vunpack.c.l.b16 %v77
    %v195 = vunpack.c.h.b16 %v77
    %v196 = vunpack.c.l.b16 %v78
    %v197 = vunpack.c.h.b16 %v78
    %v198 = vunpack.c.l.b16 %v79
    %v199 = vunpack.c.h.b16 %v79
    %v200 = vunpack.c.l.b16 %v80
    %v201 = vunpack.c.h.b16 %v80
    %v202 = vunpack.c.l.b16 %v81
    %v203 = vunpack.c.h.b16 %v81
    %v204 = vunpack.c.l.b16 %v82
    %v205 = vunpack.c.h.b16 %v82
    %v206 = vunpack.c.l.b16 %v83
    %v207 = vunpack.c.h.b16 %v83
    %v208 = vunpack.c.l.b16 %v84
    %v209 = vunpack.c.h.b16 %v84
    %v210 = vunpack.c.l.b16 %v85
    %v211 = vunpack.c.h.b16 %v85
    %v212 = vunpack.c.l.b16 %v86
    %v213 = vunpack.c.h.b16 %v86
    %v214 = vunpack.c.l.b16 %v87
    %v215 = vunpack.c.h.b16 %v87
    %v216 = vunpack.c.l.b16 %v88
    %v217 = vunpack.c.h.b16 %v88
    %v218 = vunpack.c.l.b16 %v89
    %v219 = vunpack.c.h.b16 %v89
    %v220 = vunpack.c.l.b16 %v90
    %v221 = vunpack.c.h.b16 %v90
    %v222 = vunpack.c.l.b16 %v91
    %v223 = vunpack.c.h.b16 %v91
    %v224 = vunpack.c.l.b16 %v92
    %v225 = vunpack.c.h.b16 %v92
    %v226 = vunpack.c.l.b16 %v93
    %v227 = vunpack.c.h.b16 %v93
    %v228 = vunpack.c.l.b16 %v94
    %v229 = vunpack.c.h.b16 %v94
    %v230 = vpack.c.b16 %v168, %v166
    %v231 = vpack.c.b16 %v169, %v167
    %v232 = vpack.c.b16 %v172, %v170
    %v233 = vpack.c.b16 %v173, %v171
    %v234 = vpack.c.b16 %v176, %v174
    %v235 = vpack.c.b16 %v177, %v175
    %v236 = vpack.c.b16 %v180, %v178
    %v237 = vpack.c.b16 %v181, %v179
    %v238 = vpack.c.b16 %v184, %v182
    %v239 = vpack.c.b16 %v185, %v183
    %v240 = vpack.c.b16 %v188, %v186
    %v241 = vpack.c.b16 %v189, %v187
    %v242 = vpack.c.b16 %v192, %v190
    %v243 = vpack.c.b16 %v193, %v191
    %v244 = vpack.c.b16 %v196, %v194
    %v245 = vpack.c.b16 %v197, %v195
    %v246 = vpack.c.b16 %v200, %v198
    %v247 = vpack.c.b16 %v201, %v199
    %v248 = vpack.c.b16 %v204, %v202
    %v249 = vpack.c.b16 %v205, %v203
    %v250 = vpack.c.b16 %v208, %v206
    %v251 = vpack.c.b16 %v209, %v207
    %v252 = vpack.c.b16 %v212, %v210
    %v253 = vpack.c.b16 %v213, %v211
    %v254 = vpack.c.b16 %v216, %v214
    %v255 = vpack.c.b16 %v217, %v215
    %v256 = vpack.c.b16 %v220, %v218
    %v257 = vpack.c.b16 %v221, %v219
    %v258 = vpack.c.b16 %v224, %v222
    %v259 = vpack.c.b16 %v225, %v223
    %v260 = vpack.c.b16 %v228, %v226
    %v261 = vpack.c.b16 %v229, %v227
    %v326 = vunpack.c.l.b16 %v95
    %v327 = vunpack.c.l.b16 %v96
    %v328 = vunpack.c.l.b16 %v97
    %v329 = vunpack.c.l.b16 %v98
    %v330 = vunpack.c.l.b16 %v99
    %v331 = vunpack.c.l.b16 %v100
    %v332 = vunpack.c.l.b16 %v101
    %v333 = vunpack.c.l.b16 %v102
    %v334 = vunpack.c.l.b16 %v103
    %v335 = vunpack.c.l.b16 %v104
    %v336 = vunpack.c.l.b16 %v105
    %v337 = vunpack.c.l.b16 %v106
    %v338 = vunpack.c.l.b16 %v107
    %v339 = vunpack.c.l.b16 %v108
    %v340 = vunpack.c.l.b16 %v109
    %v341 = vunpack.c.l.b16 %v110
    %v342 = vunpack.c.l.b16 %v111
    %v343 = vunpack.c.l.b16 %v112
    %v344 = vunpack.c.l.b16 %v113
    %v345 = vunpack.c.l.b16 %v114
    %v346 = vunpack.c.l.b16 %v115
    %v347 = vunpack.c.l.b16 %v116
    %v348 = vunpack.c.l.b16 %v117
    %v349 = vunpack.c.l.b16 %v118
    %v350 = vunpack.c.l.b16 %v119
    %v351 = vunpack.c.l.b16 %v120
    %v352 = vunpack.c.l.b16 %v121
    %v353 = vunpack.c.l.b16 %v122
    %v354 = vunpack.c.l.b16 %v123
    %v355 = vunpack.c.l.b16 %v124
    %v356 = vunpack.c.l.b16 %v125
    %v357 = vunpack.c.l.b16 %v126
    %v358 = vpack.c.b16 %v327, %v326
    %v359 = vpack.c.b16 %v329, %v328
    %v360 = vpack.c.b16 %v331, %v330
    %v361 = vpack.c.b16 %v333, %v332
    %v362 = vpack.c.b16 %v335, %v334
    %v363 = vpack.c.b16 %v337, %v336
    %v364 = vpack.c.b16 %v339, %v338
    %v365 = vpack.c.b16 %v341, %v340
    %v366 = vpack.c.b16 %v343, %v342
    %v367 = vpack.c.b16 %v345, %v344
    %v368 = vpack.c.b16 %v347, %v346
    %v369 = vpack.c.b16 %v349, %v348
    %v370 = vpack.c.b16 %v351, %v350
    %v371 = vpack.c.b16 %v353, %v352
    %v372 = vpack.c.b16 %v355, %v354
    %v373 = vpack.c.b16 %v357, %v356
    %390 = vmatprep.subr.bf16.mxu0 0
    %391 = vmatpush1.bf16.msra.mxu0 %v365
    %392 = vmatprep.subr.bf16.mxu0 0
    %393 = vmatpush1.bf16.msra.mxu0 %v364
    %394 = vmatprep.subr.bf16.mxu0 0
    %395 = vmatpush1.bf16.msra.mxu0 %v363
    %396 = vmatprep.subr.bf16.mxu0 0
    %397 = vmatpush1.bf16.msra.mxu0 %v362
    %398 = vmatprep.subr.bf16.mxu0 0
    %399 = vmatpush1.bf16.msra.mxu0 %v361
    %400 = vmatprep.subr.bf16.mxu0 0
    %401 = vmatpush1.bf16.msra.mxu0 %v360
    %402 = vmatprep.subr.bf16.mxu0 0
    %403 = vmatpush1.bf16.msra.mxu0 %v359
    %404 = vmatprep.subr.bf16.mxu0 0
    %405 = vmatpush1.bf16.msra.mxu0 %v358
    %406 = vmatprep.subr.bf16.mxu0 0
    %407 = vmatpush2.bf16.msra.mxu0 %v373
    %408 = vmatprep.subr.bf16.mxu0 0
    %409 = vmatpush2.bf16.msra.mxu0 %v372
    %410 = vmatprep.subr.bf16.mxu0 0
    %411 = vmatpush2.bf16.msra.mxu0 %v371
    %412 = vmatprep.subr.bf16.mxu0 0
    %413 = vmatpush2.bf16.msra.mxu0 %v370
    %414 = vmatprep.subr.bf16.mxu0 0
    %415 = vmatpush2.bf16.msra.mxu0 %v369
    %416 = vmatprep.subr.bf16.mxu0 0
    %417 = vmatpush2.bf16.msra.mxu0 %v368
    %418 = vmatprep.subr.bf16.mxu0 0
    %419 = vmatpush2.bf16.msra.mxu0 %v367
    %420 = vmatprep.subr.bf16.mxu0 0
    %421 = vmatpush2.bf16.msra.mxu0 %v366
    %422 = vmatprep.mubr.bf16.mxu0 %v231
    %423 = vmatmul.mubr.bf16.gmra.mxu0 %v230
    %v424 = vpop.f32.mrf.mxu0
    %v425 = vadd.f32 %v132, %v424
    %v426 = vpop.f32.mrf.mxu0
    %v427 = vpop.f32.mrf.mxu0
    %v428 = vadd.f32 %v132, %v427
    %v429 = vpop.f32.mrf.mxu0
    %430 = vmatprep.mubr.bf16.mxu0 %v233
    %431 = vmatmul.mubr.bf16.gmra.mxu0 %v232
    %v432 = vpop.f32.mrf.mxu0
    %v433 = vadd.f32 %v132, %v432
    %v434 = vpop.f32.mrf.mxu0
    %v435 = vpop.f32.mrf.mxu0
    %v436 = vadd.f32 %v132, %v435
    %v437 = vpop.f32.mrf.mxu0
    %438 = vmatprep.mubr.bf16.mxu0 %v235
    %439 = vmatmul.mubr.bf16.gmra.mxu0 %v234
    %v440 = vpop.f32.mrf.mxu0
    %v441 = vadd.f32 %v132, %v440
    %v442 = vpop.f32.mrf.mxu0
    %v443 = vpop.f32.mrf.mxu0
    %v444 = vadd.f32 %v132, %v443
    %v445 = vpop.f32.mrf.mxu0
    %446 = vmatprep.mubr.bf16.mxu0 %v237
    %447 = vmatmul.mubr.bf16.gmra.mxu0 %v236
    %v448 = vpop.f32.mrf.mxu0
    %v449 = vadd.f32 %v132, %v448
    %v450 = vpop.f32.mrf.mxu0
    %v451 = vpop.f32.mrf.mxu0
    %v452 = vadd.f32 %v132, %v451
    %v453 = vpop.f32.mrf.mxu0
    %454 = vmatprep.mubr.bf16.mxu0 %v239
    %455 = vmatmul.mubr.bf16.gmra.mxu0 %v238
    %v456 = vpop.f32.mrf.mxu0
    %v457 = vadd.f32 %v132, %v456
    %v458 = vpop.f32.mrf.mxu0
    %v459 = vpop.f32.mrf.mxu0
    %v460 = vadd.f32 %v132, %v459
    %v461 = vpop.f32.mrf.mxu0
    %462 = vmatprep.mubr.bf16.mxu0 %v241
    %463 = vmatmul.mubr.bf16.gmra.mxu0 %v240
    %v464 = vpop.f32.mrf.mxu0
    %v465 = vadd.f32 %v132, %v464
    %v466 = vpop.f32.mrf.mxu0
    %v467 = vpop.f32.mrf.mxu0
    %v468 = vadd.f32 %v132, %v467
    %v469 = vpop.f32.mrf.mxu0
    %470 = vmatprep.mubr.bf16.mxu0 %v243
    %471 = vmatmul.mubr.bf16.gmra.mxu0 %v242
    %v472 = vpop.f32.mrf.mxu0
    %v473 = vadd.f32 %v132, %v472
    %v474 = vpop.f32.mrf.mxu0
    %v475 = vpop.f32.mrf.mxu0
    %v476 = vadd.f32 %v132, %v475
    %v477 = vpop.f32.mrf.mxu0
    %478 = vmatprep.mubr.bf16.mxu0 %v245
    %479 = vmatmul.mubr.bf16.gmra.mxu0 %v244
    %v480 = vpop.f32.mrf.mxu0
    %v481 = vadd.f32 %v132, %v480
    %v482 = vpop.f32.mrf.mxu0
    %v483 = vpop.f32.mrf.mxu0
    %v484 = vadd.f32 %v132, %v483
    %v485 = vpop.f32.mrf.mxu0
    %486 = vmatprep.mubr.bf16.mxu0 %v247
    %487 = vmatmul.mubr.bf16.gmra.mxu0 %v246
    %v488 = vpop.f32.mrf.mxu0
    %v489 = vadd.f32 %v132, %v488
    %v490 = vpop.f32.mrf.mxu0
    %v491 = vpop.f32.mrf.mxu0
    %v492 = vadd.f32 %v132, %v491
    %v493 = vpop.f32.mrf.mxu0
    %494 = vmatprep.mubr.bf16.mxu0 %v249
    %495 = vmatmul.mubr.bf16.gmra.mxu0 %v248
    %v496 = vpop.f32.mrf.mxu0
    %v497 = vadd.f32 %v132, %v496
    %v498 = vpop.f32.mrf.mxu0
    %v499 = vpop.f32.mrf.mxu0
    %v500 = vadd.f32 %v132, %v499
    %v501 = vpop.f32.mrf.mxu0
    %502 = vmatprep.mubr.bf16.mxu0 %v251
    %503 = vmatmul.mubr.bf16.gmra.mxu0 %v250
    %v504 = vpop.f32.mrf.mxu0
    %v505 = vadd.f32 %v132, %v504
    %v506 = vpop.f32.mrf.mxu0
    %v507 = vpop.f32.mrf.mxu0
    %v508 = vadd.f32 %v132, %v507
    %v509 = vpop.f32.mrf.mxu0
    %510 = vmatprep.mubr.bf16.mxu0 %v253
    %511 = vmatmul.mubr.bf16.gmra.mxu0 %v252
    %v512 = vpop.f32.mrf.mxu0
    %v513 = vadd.f32 %v132, %v512
    %v514 = vpop.f32.mrf.mxu0
    %v515 = vpop.f32.mrf.mxu0
    %v516 = vadd.f32 %v132, %v515
    %v517 = vpop.f32.mrf.mxu0
    %518 = vmatprep.mubr.bf16.mxu0 %v255
    %519 = vmatmul.mubr.bf16.gmra.mxu0 %v254
    %v520 = vpop.f32.mrf.mxu0
    %v521 = vadd.f32 %v132, %v520
    %v522 = vpop.f32.mrf.mxu0
    %v523 = vpop.f32.mrf.mxu0
    %v524 = vadd.f32 %v132, %v523
    %v525 = vpop.f32.mrf.mxu0
    %526 = vmatprep.mubr.bf16.mxu0 %v257
    %527 = vmatmul.mubr.bf16.gmra.mxu0 %v256
    %v528 = vpop.f32.mrf.mxu0
    %v529 = vadd.f32 %v132, %v528
    %v530 = vpop.f32.mrf.mxu0
    %v531 = vpop.f32.mrf.mxu0
    %v532 = vadd.f32 %v132, %v531
    %v533 = vpop.f32.mrf.mxu0
    %534 = vmatprep.mubr.bf16.mxu0 %v259
    %535 = vmatmul.mubr.bf16.gmra.mxu0 %v258
    %v536 = vpop.f32.mrf.mxu0
    %v537 = vadd.f32 %v132, %v536
    %v538 = vpop.f32.mrf.mxu0
    %v539 = vpop.f32.mrf.mxu0
    %v540 = vadd.f32 %v132, %v539
    %v541 = vpop.f32.mrf.mxu0
    %542 = vmatprep.mubr.bf16.mxu0 %v261
    %543 = vmatmul.mubr.bf16.gmra.mxu0 %v260
    %v544 = vpop.f32.mrf.mxu0
    %v545 = vadd.f32 %v132, %v544
    %v546 = vpop.f32.mrf.mxu0
    %v547 = vpop.f32.mrf.mxu0
    %v548 = vadd.f32 %v132, %v547
    %v549 = vpop.f32.mrf.mxu0
    %550 = vdwg.mxu0
    %v551 = vmax.f32 %v425, 0.0
    %v552 = vmax.f32 %v428, 0.0
    %v553 = vmax.f32 %v433, 0.0
    %v554 = vmax.f32 %v436, 0.0
    %v555 = vmax.f32 %v441, 0.0
    %v556 = vmax.f32 %v444, 0.0
    %v557 = vmax.f32 %v449, 0.0
    %v558 = vmax.f32 %v452, 0.0
    %v559 = vmax.f32 %v457, 0.0
    %v560 = vmax.f32 %v460, 0.0
    %v561 = vmax.f32 %v465, 0.0
    %v562 = vmax.f32 %v468, 0.0
    %v563 = vmax.f32 %v473, 0.0
    %v564 = vmax.f32 %v476, 0.0
    %v565 = vmax.f32 %v481, 0.0
    %v566 = vmax.f32 %v484, 0.0
    %v567 = vmax.f32 %v489, 0.0
    %v568 = vmax.f32 %v492, 0.0
    %v569 = vmax.f32 %v497, 0.0
    %v570 = vmax.f32 %v500, 0.0
    %v571 = vmax.f32 %v505, 0.0
    %v572 = vmax.f32 %v508, 0.0
    %v573 = vmax.f32 %v513, 0.0
    %v574 = vmax.f32 %v516, 0.0
    %v575 = vmax.f32 %v521, 0.0
    %v576 = vmax.f32 %v524, 0.0
    %v577 = vmax.f32 %v529, 0.0
    %v578 = vmax.f32 %v532, 0.0
    %v579 = vmax.f32 %v537, 0.0
    %v580 = vmax.f32 %v540, 0.0
    %v581 = vmax.f32 %v545, 0.0
    %v582 = vmax.f32 %v548, 0.0
    %v583 = vpack.c.bf16 %v552, %v551
    %v584 = vpack.c.bf16 %v554, %v553
    %v585 = vpack.c.bf16 %v556, %v555
    %v586 = vpack.c.bf16 %v558, %v557
    %v587 = vpack.c.bf16 %v560, %v559
    %v588 = vpack.c.bf16 %v562, %v561
    %v589 = vpack.c.bf16 %v564, %v563
    %v590 = vpack.c.bf16 %v566, %v565
    %v591 = vpack.c.bf16 %v568, %v567
    %v592 = vpack.c.bf16 %v570, %v569
    %v593 = vpack.c.bf16 %v572, %v571
    %v594 = vpack.c.bf16 %v574, %v573
    %v595 = vpack.c.bf16 %v576, %v575
    %v596 = vpack.c.bf16 %v578, %v577
    %v597 = vpack.c.bf16 %v580, %v579
    %v598 = vpack.c.bf16 %v582, %v581
    %v599 = vld [vmem:[#allocation7] sm:$0xf]
    %v600 = vld [vmem:[#allocation7 + $0x4] sm:$0xf]
    %v601 = vld [vmem:[#allocation7 + $0x8] sm:$0xf]
    %v602 = vld [vmem:[#allocation7 + $0xc] sm:$0xf]
    %v603 = vld [vmem:[#allocation7 + $0x10] sm:$0xf]
    %v604 = vld [vmem:[#allocation7 + $0x14] sm:$0xf]
    %v605 = vld [vmem:[#allocation7 + $0x18] sm:$0xf]
    %v606 = vld [vmem:[#allocation7 + $0x1c] sm:$0xf]
    %v607 = vld [vmem:[#allocation7 + $0x20] sm:$0xf]
    %v608 = vld [vmem:[#allocation7 + $0x24] sm:$0xf]
    %v609 = vld [vmem:[#allocation7 + $0x28] sm:$0xf]
    %v610 = vld [vmem:[#allocation7 + $0x2c] sm:$0xf]
    %v611 = vld [vmem:[#allocation7 + $0x30] sm:$0xf]
    %v612 = vld [vmem:[#allocation7 + $0x34] sm:$0xf]
    %v613 = vld [vmem:[#allocation7 + $0x38] sm:$0xf]
    %v614 = vld [vmem:[#allocation7 + $0x3c] sm:$0xf]
    %v631 = vunpack.c.l.b16 %v599
    %v632 = vunpack.c.l.b16 %v600
    %v633 = vunpack.c.l.b16 %v601
    %v634 = vunpack.c.l.b16 %v602
    %v635 = vunpack.c.l.b16 %v603
    %v636 = vunpack.c.l.b16 %v604
    %v637 = vunpack.c.l.b16 %v605
    %v638 = vunpack.c.l.b16 %v606
    %v639 = vunpack.c.l.b16 %v607
    %v640 = vunpack.c.l.b16 %v608
    %v641 = vunpack.c.l.b16 %v609
    %v642 = vunpack.c.l.b16 %v610
    %v643 = vunpack.c.l.b16 %v611
    %v644 = vunpack.c.l.b16 %v612
    %v645 = vunpack.c.l.b16 %v613
    %v646 = vunpack.c.l.b16 %v614
    %v647 = vpack.c.b16 %v632, %v631
    %v648 = vpack.c.b16 %v634, %v633
    %v649 = vpack.c.b16 %v636, %v635
    %v650 = vpack.c.b16 %v638, %v637
    %v651 = vpack.c.b16 %v640, %v639
    %v652 = vpack.c.b16 %v642, %v641
    %v653 = vpack.c.b16 %v644, %v643
    %v654 = vpack.c.b16 %v646, %v645
    %663 = vmatprep.subr.bf16.mxu0 0
    %664 = vmatpush1.bf16.msra.mxu0 %v654
    %665 = vmatprep.subr.bf16.mxu0 0
    %666 = vmatpush1.bf16.msra.mxu0 %v653
    %667 = vmatprep.subr.bf16.mxu0 0
    %668 = vmatpush1.bf16.msra.mxu0 %v652
    %669 = vmatprep.subr.bf16.mxu0 0
    %670 = vmatpush1.bf16.msra.mxu0 %v651
    %671 = vmatprep.subr.bf16.mxu0 0
    %672 = vmatpush1.bf16.msra.mxu0 %v650
    %673 = vmatprep.subr.bf16.mxu0 0
    %674 = vmatpush1.bf16.msra.mxu0 %v649
    %675 = vmatprep.subr.bf16.mxu0 0
    %676 = vmatpush1.bf16.msra.mxu0 %v648
    %677 = vmatprep.subr.bf16.mxu0 0
    %678 = vmatpush1.bf16.msra.mxu0 %v647
    %679 = vmatprep.subr.bf16.mxu0 0
    %680 = vmatpush2.bf16.msra.mxu0 0
    %681 = vmatprep.subr.bf16.mxu0 0
    %682 = vmatpush2.bf16.msra.mxu0 0
    %683 = vmatprep.subr.bf16.mxu0 0
    %684 = vmatpush2.bf16.msra.mxu0 0
    %685 = vmatprep.subr.bf16.mxu0 0
    %686 = vmatpush2.bf16.msra.mxu0 0
    %687 = vmatprep.subr.bf16.mxu0 0
    %688 = vmatpush2.bf16.msra.mxu0 0
    %689 = vmatprep.subr.bf16.mxu0 0
    %690 = vmatpush2.bf16.msra.mxu0 0
    %691 = vmatprep.subr.bf16.mxu0 0
    %692 = vmatpush2.bf16.msra.mxu0 0
    %693 = vmatprep.subr.bf16.mxu0 0
    %694 = vmatpush2.bf16.msra.mxu0 0
    %695 = vmatprep.mubr.bf16.mxu0 0
    %696 = vmatmul.mubr.bf16.gmra.mxu0 %v583
    %v697 = vpop.f32.mrf.mxu0
    %v698 = vadd.f32 0.0, %v697
    %v699 = vpop.f32.mrf.mxu0
    %v700 = vpop.f32.mrf.mxu0
    %v701 = vadd.f32 0.0, %v700
    %v702 = vpop.f32.mrf.mxu0
    %703 = vmatprep.mubr.bf16.mxu0 0
    %704 = vmatmul.mubr.bf16.gmra.mxu0 %v584
    %v705 = vpop.f32.mrf.mxu0
    %v706 = vadd.f32 0.0, %v705
    %v707 = vpop.f32.mrf.mxu0
    %v708 = vpop.f32.mrf.mxu0
    %v709 = vadd.f32 0.0, %v708
    %v710 = vpop.f32.mrf.mxu0
    %711 = vmatprep.mubr.bf16.mxu0 0
    %712 = vmatmul.mubr.bf16.gmra.mxu0 %v585
    %v713 = vpop.f32.mrf.mxu0
    %v714 = vadd.f32 0.0, %v713
    %v715 = vpop.f32.mrf.mxu0
    %v716 = vpop.f32.mrf.mxu0
    %v717 = vadd.f32 0.0, %v716
    %v718 = vpop.f32.mrf.mxu0
    %719 = vmatprep.mubr.bf16.mxu0 0
    %720 = vmatmul.mubr.bf16.gmra.mxu0 %v586
    %v721 = vpop.f32.mrf.mxu0
    %v722 = vadd.f32 0.0, %v721
    %v723 = vpop.f32.mrf.mxu0
    %v724 = vpop.f32.mrf.mxu0
    %v725 = vadd.f32 0.0, %v724
    %v726 = vpop.f32.mrf.mxu0
    %727 = vmatprep.mubr.bf16.mxu0 0
    %728 = vmatmul.mubr.bf16.gmra.mxu0 %v587
    %v729 = vpop.f32.mrf.mxu0
    %v730 = vadd.f32 0.0, %v729
    %v731 = vpop.f32.mrf.mxu0
    %v732 = vpop.f32.mrf.mxu0
    %v733 = vadd.f32 0.0, %v732
    %v734 = vpop.f32.mrf.mxu0
    %735 = vmatprep.mubr.bf16.mxu0 0
    %736 = vmatmul.mubr.bf16.gmra.mxu0 %v588
    %v737 = vpop.f32.mrf.mxu0
    %v738 = vadd.f32 0.0, %v737
    %v739 = vpop.f32.mrf.mxu0
    %v740 = vpop.f32.mrf.mxu0
    %v741 = vadd.f32 0.0, %v740
    %v742 = vpop.f32.mrf.mxu0
    %743 = vmatprep.mubr.bf16.mxu0 0
    %744 = vmatmul.mubr.bf16.gmra.mxu0 %v589
    %v745 = vpop.f32.mrf.mxu0
    %v746 = vadd.f32 0.0, %v745
    %v747 = vpop.f32.mrf.mxu0
    %v748 = vpop.f32.mrf.mxu0
    %v749 = vadd.f32 0.0, %v748
    %v750 = vpop.f32.mrf.mxu0
    %751 = vmatprep.mubr.bf16.mxu0 0
    %752 = vmatmul.mubr.bf16.gmra.mxu0 %v590
    %v753 = vpop.f32.mrf.mxu0
    %v754 = vadd.f32 0.0, %v753
    %v755 = vpop.f32.mrf.mxu0
    %v756 = vpop.f32.mrf.mxu0
    %v757 = vadd.f32 0.0, %v756
    %v758 = vpop.f32.mrf.mxu0
    %759 = vmatprep.mubr.bf16.mxu0 0
    %760 = vmatmul.mubr.bf16.gmra.mxu0 %v591
    %v761 = vpop.f32.mrf.mxu0
    %v762 = vadd.f32 0.0, %v761
    %v763 = vpop.f32.mrf.mxu0
    %v764 = vpop.f32.mrf.mxu0
    %v765 = vadd.f32 0.0, %v764
    %v766 = vpop.f32.mrf.mxu0
    %767 = vmatprep.mubr.bf16.mxu0 0
    %768 = vmatmul.mubr.bf16.gmra.mxu0 %v592
    %v769 = vpop.f32.mrf.mxu0
    %v770 = vadd.f32 0.0, %v769
    %v771 = vpop.f32.mrf.mxu0
    %v772 = vpop.f32.mrf.mxu0
    %v773 = vadd.f32 0.0, %v772
    %v774 = vpop.f32.mrf.mxu0
    %775 = vmatprep.mubr.bf16.mxu0 0
    %776 = vmatmul.mubr.bf16.gmra.mxu0 %v593
    %v777 = vpop.f32.mrf.mxu0
    %v778 = vadd.f32 0.0, %v777
    %v779 = vpop.f32.mrf.mxu0
    %v780 = vpop.f32.mrf.mxu0
    %v781 = vadd.f32 0.0, %v780
    %v782 = vpop.f32.mrf.mxu0
    %783 = vmatprep.mubr.bf16.mxu0 0
    %784 = vmatmul.mubr.bf16.gmra.mxu0 %v594
    %v785 = vpop.f32.mrf.mxu0
    %v786 = vadd.f32 0.0, %v785
    %v787 = vpop.f32.mrf.mxu0
    %v788 = vpop.f32.mrf.mxu0
    %v789 = vadd.f32 0.0, %v788
    %v790 = vpop.f32.mrf.mxu0
    %791 = vmatprep.mubr.bf16.mxu0 0
    %792 = vmatmul.mubr.bf16.gmra.mxu0 %v595
    %v793 = vpop.f32.mrf.mxu0
    %v794 = vadd.f32 0.0, %v793
    %v795 = vpop.f32.mrf.mxu0
    %v796 = vpop.f32.mrf.mxu0
    %v797 = vadd.f32 0.0, %v796
    %v798 = vpop.f32.mrf.mxu0
    %799 = vmatprep.mubr.bf16.mxu0 0
    %800 = vmatmul.mubr.bf16.gmra.mxu0 %v596
    %v801 = vpop.f32.mrf.mxu0
    %v802 = vadd.f32 0.0, %v801
    %v803 = vpop.f32.mrf.mxu0
    %v804 = vpop.f32.mrf.mxu0
    %v805 = vadd.f32 0.0, %v804
    %v806 = vpop.f32.mrf.mxu0
    %807 = vmatprep.mubr.bf16.mxu0 0
    %808 = vmatmul.mubr.bf16.gmra.mxu0 %v597
    %v809 = vpop.f32.mrf.mxu0
    %v810 = vadd.f32 0.0, %v809
    %v811 = vpop.f32.mrf.mxu0
    %v812 = vpop.f32.mrf.mxu0
    %v813 = vadd.f32 0.0, %v812
    %v814 = vpop.f32.mrf.mxu0
    %815 = vmatprep.mubr.bf16.mxu0 0
    %816 = vmatmul.mubr.bf16.gmra.mxu0 %v598
    %v817 = vpop.f32.mrf.mxu0
    %v818 = vadd.f32 0.0, %v817
    %v819 = vpop.f32.mrf.mxu0
    %v820 = vpop.f32.mrf.mxu0
    %v821 = vadd.f32 0.0, %v820
    %v822 = vpop.f32.mrf.mxu0
    %823 = vdwg.mxu0
    %v824 = vpack.c.bf16 %v701, %v698
    %v825 = vpack.c.bf16 %v709, %v706
    %v826 = vpack.c.bf16 %v717, %v714
    %v827 = vpack.c.bf16 %v725, %v722
    %v828 = vpack.c.bf16 %v733, %v730
    %v829 = vpack.c.bf16 %v741, %v738
    %v830 = vpack.c.bf16 %v749, %v746
    %v831 = vpack.c.bf16 %v757, %v754
    %v832 = vpack.c.bf16 %v765, %v762
    %v833 = vpack.c.bf16 %v773, %v770
    %v834 = vpack.c.bf16 %v781, %v778
    %v835 = vpack.c.bf16 %v789, %v786
    %v836 = vpack.c.bf16 %v797, %v794
    %v837 = vpack.c.bf16 %v805, %v802
    %v838 = vpack.c.bf16 %v813, %v810
    %v839 = vpack.c.bf16 %v821, %v818
    %v840 = vld [vmem:[%s4] sm:$0x1]
    %v842 = vlaneseq
    %v843 = vshrl.u32 %v842, 7
    %v844 = vsub.s32 0, %v843
    %v845 = vrot.slane %v840, %v844
    %847 = vmatprep.subr.bf16.mxu0 0
    %848 = vmatpush1.bf16.msra.mxu0 %v831
    %849 = vmatprep.subr.bf16.mxu0 0
    %850 = vmatpush1.bf16.msra.mxu0 %v830
    %851 = vmatprep.subr.bf16.mxu0 0
    %852 = vmatpush1.bf16.msra.mxu0 %v829
    %853 = vmatprep.subr.bf16.mxu0 0
    %854 = vmatpush1.bf16.msra.mxu0 %v828
    %855 = vmatprep.subr.bf16.mxu0 0
    %856 = vmatpush1.bf16.msra.mxu0 %v827
    %857 = vmatprep.subr.bf16.mxu0 0
    %858 = vmatpush1.bf16.msra.mxu0 %v826
    %859 = vmatprep.subr.bf16.mxu0 0
    %860 = vmatpush1.bf16.msra.mxu0 %v825
    %861 = vmatprep.subr.bf16.mxu0 0
    %862 = vmatpush1.bf16.msra.mxu0 %v824
    %863 = vmatprep.subr.bf16.mxu0 0
    %864 = vmatpush2.bf16.msra.mxu0 %v839
    %865 = vmatprep.subr.bf16.mxu0 0
    %866 = vmatpush2.bf16.msra.mxu0 %v838
    %867 = vmatprep.subr.bf16.mxu0 0
    %868 = vmatpush2.bf16.msra.mxu0 %v837
    %869 = vmatprep.subr.bf16.mxu0 0
    %870 = vmatpush2.bf16.msra.mxu0 %v836
    %871 = vmatprep.subr.bf16.mxu0 0
    %872 = vmatpush2.bf16.msra.mxu0 %v835
    %873 = vmatprep.subr.bf16.mxu0 0
    %874 = vmatpush2.bf16.msra.mxu0 %v834
    %875 = vmatprep.subr.bf16.mxu0 0
    %876 = vmatpush2.bf16.msra.mxu0 %v833
    %877 = vmatprep.subr.bf16.mxu0 0
    %878 = vmatpush2.bf16.msra.mxu0 %v832
    %879 = vmatprep.mubr.bf16.mxu0 %v231
    %880 = vmatmul.mubr.bf16.gmra.mxu0 %v230
    %v881 = vpop.f32.mrf.mxu0
    %v882 = vadd.f32 %v845, %v881
    %v883 = vpop.f32.mrf.mxu0
    %v884 = vpop.f32.mrf.mxu0
    %v885 = vadd.f32 %v845, %v884
    %v886 = vpop.f32.mrf.mxu0
    %887 = vmatprep.mubr.bf16.mxu0 %v233
    %888 = vmatmul.mubr.bf16.gmra.mxu0 %v232
    %v889 = vpop.f32.mrf.mxu0
    %v890 = vadd.f32 %v845, %v889
    %v891 = vpop.f32.mrf.mxu0
    %v892 = vpop.f32.mrf.mxu0
    %v893 = vadd.f32 %v845, %v892
    %v894 = vpop.f32.mrf.mxu0
    %895 = vmatprep.mubr.bf16.mxu0 %v235
    %896 = vmatmul.mubr.bf16.gmra.mxu0 %v234
    %v897 = vpop.f32.mrf.mxu0
    %v898 = vadd.f32 %v845, %v897
    %v899 = vpop.f32.mrf.mxu0
    %v900 = vpop.f32.mrf.mxu0
    %v901 = vadd.f32 %v845, %v900
    %v902 = vpop.f32.mrf.mxu0
    %903 = vmatprep.mubr.bf16.mxu0 %v237
    %904 = vmatmul.mubr.bf16.gmra.mxu0 %v236
    %v905 = vpop.f32.mrf.mxu0
    %v906 = vadd.f32 %v845, %v905
    %v907 = vpop.f32.mrf.mxu0
    %v908 = vpop.f32.mrf.mxu0
    %v909 = vadd.f32 %v845, %v908
    %v910 = vpop.f32.mrf.mxu0
    %911 = vmatprep.mubr.bf16.mxu0 %v239
    %912 = vmatmul.mubr.bf16.gmra.mxu0 %v238
    %v913 = vpop.f32.mrf.mxu0
    %v914 = vadd.f32 %v845, %v913
    %v915 = vpop.f32.mrf.mxu0
    %v916 = vpop.f32.mrf.mxu0
    %v917 = vadd.f32 %v845, %v916
    %v918 = vpop.f32.mrf.mxu0
    %919 = vmatprep.mubr.bf16.mxu0 %v241
    %920 = vmatmul.mubr.bf16.gmra.mxu0 %v240
    %v921 = vpop.f32.mrf.mxu0
    %v922 = vadd.f32 %v845, %v921
    %v923 = vpop.f32.mrf.mxu0
    %v924 = vpop.f32.mrf.mxu0
    %v925 = vadd.f32 %v845, %v924
    %v926 = vpop.f32.mrf.mxu0
    %927 = vmatprep.mubr.bf16.mxu0 %v243
    %928 = vmatmul.mubr.bf16.gmra.mxu0 %v242
    %v929 = vpop.f32.mrf.mxu0
    %v930 = vadd.f32 %v845, %v929
    %v931 = vpop.f32.mrf.mxu0
    %v932 = vpop.f32.mrf.mxu0
    %v933 = vadd.f32 %v845, %v932
    %v934 = vpop.f32.mrf.mxu0
    %935 = vmatprep.mubr.bf16.mxu0 %v245
    %936 = vmatmul.mubr.bf16.gmra.mxu0 %v244
    %v937 = vpop.f32.mrf.mxu0
    %v938 = vadd.f32 %v845, %v937
    %v939 = vpop.f32.mrf.mxu0
    %v940 = vpop.f32.mrf.mxu0
    %v941 = vadd.f32 %v845, %v940
    %v942 = vpop.f32.mrf.mxu0
    %943 = vmatprep.mubr.bf16.mxu0 %v247
    %944 = vmatmul.mubr.bf16.gmra.mxu0 %v246
    %v945 = vpop.f32.mrf.mxu0
    %v946 = vadd.f32 %v845, %v945
    %v947 = vpop.f32.mrf.mxu0
    %v948 = vpop.f32.mrf.mxu0
    %v949 = vadd.f32 %v845, %v948
    %v950 = vpop.f32.mrf.mxu0
    %951 = vmatprep.mubr.bf16.mxu0 %v249
    %952 = vmatmul.mubr.bf16.gmra.mxu0 %v248
    %v953 = vpop.f32.mrf.mxu0
    %v954 = vadd.f32 %v845, %v953
    %v955 = vpop.f32.mrf.mxu0
    %v956 = vpop.f32.mrf.mxu0
    %v957 = vadd.f32 %v845, %v956
    %v958 = vpop.f32.mrf.mxu0
    %959 = vmatprep.mubr.bf16.mxu0 %v251
    %960 = vmatmul.mubr.bf16.gmra.mxu0 %v250
    %v961 = vpop.f32.mrf.mxu0
    %v962 = vadd.f32 %v845, %v961
    %v963 = vpop.f32.mrf.mxu0
    %v964 = vpop.f32.mrf.mxu0
    %v965 = vadd.f32 %v845, %v964
    %v966 = vpop.f32.mrf.mxu0
    %967 = vmatprep.mubr.bf16.mxu0 %v253
    %968 = vmatmul.mubr.bf16.gmra.mxu0 %v252
    %v969 = vpop.f32.mrf.mxu0
    %v970 = vadd.f32 %v845, %v969
    %v971 = vpop.f32.mrf.mxu0
    %v972 = vpop.f32.mrf.mxu0
    %v973 = vadd.f32 %v845, %v972
    %v974 = vpop.f32.mrf.mxu0
    %975 = vmatprep.mubr.bf16.mxu0 %v255
    %976 = vmatmul.mubr.bf16.gmra.mxu0 %v254
    %v977 = vpop.f32.mrf.mxu0
    %v978 = vadd.f32 %v845, %v977
    %v979 = vpop.f32.mrf.mxu0
    %v980 = vpop.f32.mrf.mxu0
    %v981 = vadd.f32 %v845, %v980
    %v982 = vpop.f32.mrf.mxu0
    %983 = vmatprep.mubr.bf16.mxu0 %v257
    %984 = vmatmul.mubr.bf16.gmra.mxu0 %v256
    %v985 = vpop.f32.mrf.mxu0
    %v986 = vadd.f32 %v845, %v985
    %v987 = vpop.f32.mrf.mxu0
    %v988 = vpop.f32.mrf.mxu0
    %v989 = vadd.f32 %v845, %v988
    %v990 = vpop.f32.mrf.mxu0
    %991 = vmatprep.mubr.bf16.mxu0 %v259
    %992 = vmatmul.mubr.bf16.gmra.mxu0 %v258
    %v993 = vpop.f32.mrf.mxu0
    %v994 = vadd.f32 %v845, %v993
    %v995 = vpop.f32.mrf.mxu0
    %v996 = vpop.f32.mrf.mxu0
    %v997 = vadd.f32 %v845, %v996
    %v998 = vpop.f32.mrf.mxu0
    %999 = vmatprep.mubr.bf16.mxu0 %v261
    %1000 = vmatmul.mubr.bf16.gmra.mxu0 %v260
    %v1001 = vpop.f32.mrf.mxu0
    %v1002 = vadd.f32 %v845, %v1001
    %v1003 = vpop.f32.mrf.mxu0
    %v1004 = vpop.f32.mrf.mxu0
    %v1005 = vadd.f32 %v845, %v1004
    %v1006 = vpop.f32.mrf.mxu0
    %1007 = vdwg.mxu0
    %v1008 = vmax.f32 %v882, 0.0
    %v1009 = vmax.f32 %v885, 0.0
    %v1010 = vmax.f32 %v890, 0.0
    %v1011 = vmax.f32 %v893, 0.0
    %v1012 = vmax.f32 %v898, 0.0
    %v1013 = vmax.f32 %v901, 0.0
    %v1014 = vmax.f32 %v906, 0.0
    %v1015 = vmax.f32 %v909, 0.0
    %v1016 = vmax.f32 %v914, 0.0
    %v1017 = vmax.f32 %v917, 0.0
    %v1018 = vmax.f32 %v922, 0.0
    %v1019 = vmax.f32 %v925, 0.0
    %v1020 = vmax.f32 %v930, 0.0
    %v1021 = vmax.f32 %v933, 0.0
    %v1022 = vmax.f32 %v938, 0.0
    %v1023 = vmax.f32 %v941, 0.0
    %v1024 = vmax.f32 %v946, 0.0
    %v1025 = vmax.f32 %v949, 0.0
    %v1026 = vmax.f32 %v954, 0.0
    %v1027 = vmax.f32 %v957, 0.0
    %v1028 = vmax.f32 %v962, 0.0
    %v1029 = vmax.f32 %v965, 0.0
    %v1030 = vmax.f32 %v970, 0.0
    %v1031 = vmax.f32 %v973, 0.0
    %v1032 = vmax.f32 %v978, 0.0
    %v1033 = vmax.f32 %v981, 0.0
    %v1034 = vmax.f32 %v986, 0.0
    %v1035 = vmax.f32 %v989, 0.0
    %v1036 = vmax.f32 %v994, 0.0
    %v1037 = vmax.f32 %v997, 0.0
    %v1038 = vmax.f32 %v1002, 0.0
    %v1039 = vmax.f32 %v1005, 0.0
    %v1040 = vpack.c.bf16 %v1009, %v1008
    %v1041 = vpack.c.bf16 %v1011, %v1010
    %v1042 = vpack.c.bf16 %v1013, %v1012
    %v1043 = vpack.c.bf16 %v1015, %v1014
    %v1044 = vpack.c.bf16 %v1017, %v1016
    %v1045 = vpack.c.bf16 %v1019, %v1018
    %v1046 = vpack.c.bf16 %v1021, %v1020
    %v1047 = vpack.c.bf16 %v1023, %v1022
    %v1048 = vpack.c.bf16 %v1025, %v1024
    %v1049 = vpack.c.bf16 %v1027, %v1026
    %v1050 = vpack.c.bf16 %v1029, %v1028
    %v1051 = vpack.c.bf16 %v1031, %v1030
    %v1052 = vpack.c.bf16 %v1033, %v1032
    %v1053 = vpack.c.bf16 %v1035, %v1034
    %v1054 = vpack.c.bf16 %v1037, %v1036
    %v1055 = vpack.c.bf16 %v1039, %v1038
    %v1072 = vunpack.c.l.b16 %v1040
    %v1073 = vunpack.c.h.b16 %v1040
    %v1074 = vunpack.c.l.b16 %v1041
    %v1075 = vunpack.c.h.b16 %v1041
    %v1076 = vunpack.c.l.b16 %v1042
    %v1077 = vunpack.c.h.b16 %v1042
    %v1078 = vunpack.c.l.b16 %v1043
    %v1079 = vunpack.c.h.b16 %v1043
    %v1080 = vunpack.c.l.b16 %v1044
    %v1081 = vunpack.c.h.b16 %v1044
    %v1082 = vunpack.c.l.b16 %v1045
    %v1083 = vunpack.c.h.b16 %v1045
    %v1084 = vunpack.c.l.b16 %v1046
    %v1085 = vunpack.c.h.b16 %v1046
    %v1086 = vunpack.c.l.b16 %v1047
    %v1087 = vunpack.c.h.b16 %v1047
    %v1088 = vunpack.c.l.b16 %v1048
    %v1089 = vunpack.c.h.b16 %v1048
    %v1090 = vunpack.c.l.b16 %v1049
    %v1091 = vunpack.c.h.b16 %v1049
    %v1092 = vunpack.c.l.b16 %v1050
    %v1093 = vunpack.c.h.b16 %v1050
    %v1094 = vunpack.c.l.b16 %v1051
    %v1095 = vunpack.c.h.b16 %v1051
    %v1096 = vunpack.c.l.b16 %v1052
    %v1097 = vunpack.c.h.b16 %v1052
    %v1098 = vunpack.c.l.b16 %v1053
    %v1099 = vunpack.c.h.b16 %v1053
    %v1100 = vunpack.c.l.b16 %v1054
    %v1101 = vunpack.c.h.b16 %v1054
    %v1102 = vunpack.c.l.b16 %v1055
    %v1103 = vunpack.c.h.b16 %v1055
    %v1104 = vpack.c.b16 %v1072, %v1072
    %v1105 = vpack.c.b16 %v1073, %v1073
    %v1106 = vpack.c.b16 %v1074, %v1074
    %v1107 = vpack.c.b16 %v1075, %v1075
    %v1108 = vpack.c.b16 %v1076, %v1076
    %v1109 = vpack.c.b16 %v1077, %v1077
    %v1110 = vpack.c.b16 %v1078, %v1078
    %v1111 = vpack.c.b16 %v1079, %v1079
    %v1112 = vpack.c.b16 %v1080, %v1080
    %v1113 = vpack.c.b16 %v1081, %v1081
    %v1114 = vpack.c.b16 %v1082, %v1082
    %v1115 = vpack.c.b16 %v1083, %v1083
    %v1116 = vpack.c.b16 %v1084, %v1084
    %v1117 = vpack.c.b16 %v1085, %v1085
    %v1118 = vpack.c.b16 %v1086, %v1086
    %v1119 = vpack.c.b16 %v1087, %v1087
    %v1120 = vpack.c.b16 %v1088, %v1088
    %v1121 = vpack.c.b16 %v1089, %v1089
    %v1122 = vpack.c.b16 %v1090, %v1090
    %v1123 = vpack.c.b16 %v1091, %v1091
    %v1124 = vpack.c.b16 %v1092, %v1092
    %v1125 = vpack.c.b16 %v1093, %v1093
    %v1126 = vpack.c.b16 %v1094, %v1094
    %v1127 = vpack.c.b16 %v1095, %v1095
    %v1128 = vpack.c.b16 %v1096, %v1096
    %v1129 = vpack.c.b16 %v1097, %v1097
    %v1130 = vpack.c.b16 %v1098, %v1098
    %v1131 = vpack.c.b16 %v1099, %v1099
    %v1132 = vpack.c.b16 %v1100, %v1100
    %v1133 = vpack.c.b16 %v1101, %v1101
    %v1134 = vpack.c.b16 %v1102, %v1102
    %v1135 = vpack.c.b16 %v1103, %v1103
    %1168 = vst [vmem:[#allocation8] sm:$0xf] %v1104
    %1169 = vst [vmem:[#allocation8 + $0x8] sm:$0xf] %v1105
    %1170 = vst [vmem:[#allocation8 + $0x10] sm:$0xf] %v1106
    %1171 = vst [vmem:[#allocation8 + $0x18] sm:$0xf] %v1107
    %1172 = vst [vmem:[#allocation8 + $0x20] sm:$0xf] %v1108
    %1173 = vst [vmem:[#allocation8 + $0x28] sm:$0xf] %v1109
    %1174 = vst [vmem:[#allocation8 + $0x30] sm:$0xf] %v1110
    %1175 = vst [vmem:[#allocation8 + $0x38] sm:$0xf] %v1111
    %1176 = vst [vmem:[#allocation8 + $0x40] sm:$0xf] %v1112
    %1177 = vst [vmem:[#allocation8 + $0x48] sm:$0xf] %v1113
    %1178 = vst [vmem:[#allocation8 + $0x50] sm:$0xf] %v1114
    %1179 = vst [vmem:[#allocation8 + $0x58] sm:$0xf] %v1115
    %1180 = vst [vmem:[#allocation8 + $0x60] sm:$0xf] %v1116
    %1181 = vst [vmem:[#allocation8 + $0x68] sm:$0xf] %v1117
    %1182 = vst [vmem:[#allocation8 + $0x70] sm:$0xf] %v1118
    %1183 = vst [vmem:[#allocation8 + $0x78] sm:$0xf] %v1119
    %1184 = vst [vmem:[#allocation8 + $0x80] sm:$0xf] %v1120
    %1185 = vst [vmem:[#allocation8 + $0x88] sm:$0xf] %v1121
    %1186 = vst [vmem:[#allocation8 + $0x90] sm:$0xf] %v1122
    %1187 = vst [vmem:[#allocation8 + $0x98] sm:$0xf] %v1123
    %1188 = vst [vmem:[#allocation8 + $0xa0] sm:$0xf] %v1124
    %1189 = vst [vmem:[#allocation8 + $0xa8] sm:$0xf] %v1125
    %1190 = vst [vmem:[#allocation8 + $0xb0] sm:$0xf] %v1126
    %1191 = vst [vmem:[#allocation8 + $0xb8] sm:$0xf] %v1127
    %1192 = vst [vmem:[#allocation8 + $0xc0] sm:$0xf] %v1128
    %1193 = vst [vmem:[#allocation8 + $0xc8] sm:$0xf] %v1129
    %1194 = vst [vmem:[#allocation8 + $0xd0] sm:$0xf] %v1130
    %1195 = vst [vmem:[#allocation8 + $0xd8] sm:$0xf] %v1131
    %1196 = vst [vmem:[#allocation8 + $0xe0] sm:$0xf] %v1132
    %1197 = vst [vmem:[#allocation8 + $0xe8] sm:$0xf] %v1133
    %1198 = vst [vmem:[#allocation8 + $0xf0] sm:$0xf] %v1134
    %1199 = vst [vmem:[#allocation8 + $0xf8] sm:$0xf] %v1135
    %v1216 = vunpack.c.l.b16 %v583
    %v1217 = vunpack.c.h.b16 %v583
    %v1218 = vunpack.c.l.b16 %v584
    %v1219 = vunpack.c.h.b16 %v584
    %v1220 = vunpack.c.l.b16 %v585
    %v1221 = vunpack.c.h.b16 %v585
    %v1222 = vunpack.c.l.b16 %v586
    %v1223 = vunpack.c.h.b16 %v586
    %v1224 = vunpack.c.l.b16 %v587
    %v1225 = vunpack.c.h.b16 %v587
    %v1226 = vunpack.c.l.b16 %v588
    %v1227 = vunpack.c.h.b16 %v588
    %v1228 = vunpack.c.l.b16 %v589
    %v1229 = vunpack.c.h.b16 %v589
    %v1230 = vunpack.c.l.b16 %v590
    %v1231 = vunpack.c.h.b16 %v590
    %v1232 = vunpack.c.l.b16 %v591
    %v1233 = vunpack.c.h.b16 %v591
    %v1234 = vunpack.c.l.b16 %v592
    %v1235 = vunpack.c.h.b16 %v592
    %v1236 = vunpack.c.l.b16 %v593
    %v1237 = vunpack.c.h.b16 %v593
    %v1238 = vunpack.c.l.b16 %v594
    %v1239 = vunpack.c.h.b16 %v594
    %v1240 = vunpack.c.l.b16 %v595
    %v1241 = vunpack.c.h.b16 %v595
    %v1242 = vunpack.c.l.b16 %v596
    %v1243 = vunpack.c.h.b16 %v596
    %v1244 = vunpack.c.l.b16 %v597
    %v1245 = vunpack.c.h.b16 %v597
    %v1246 = vunpack.c.l.b16 %v598
    %v1247 = vunpack.c.h.b16 %v598
    %v1248 = vpack.c.b16 %v1216, %v1216
    %v1249 = vpack.c.b16 %v1217, %v1217
    %v1250 = vpack.c.b16 %v1218, %v1218
    %v1251 = vpack.c.b16 %v1219, %v1219
    %v1252 = vpack.c.b16 %v1220, %v1220
    %v1253 = vpack.c.b16 %v1221, %v1221
    %v1254 = vpack.c.b16 %v1222, %v1222
    %v1255 = vpack.c.b16 %v1223, %v1223
    %v1256 = vpack.c.b16 %v1224, %v1224
    %v1257 = vpack.c.b16 %v1225, %v1225
    %v1258 = vpack.c.b16 %v1226, %v1226
    %v1259 = vpack.c.b16 %v1227, %v1227
    %v1260 = vpack.c.b16 %v1228, %v1228
    %v1261 = vpack.c.b16 %v1229, %v1229
    %v1262 = vpack.c.b16 %v1230, %v1230
    %v1263 = vpack.c.b16 %v1231, %v1231
    %v1264 = vpack.c.b16 %v1232, %v1232
    %v1265 = vpack.c.b16 %v1233, %v1233
    %v1266 = vpack.c.b16 %v1234, %v1234
    %v1267 = vpack.c.b16 %v1235, %v1235
    %v1268 = vpack.c.b16 %v1236, %v1236
    %v1269 = vpack.c.b16 %v1237, %v1237
    %v1270 = vpack.c.b16 %v1238, %v1238
    %v1271 = vpack.c.b16 %v1239, %v1239
    %v1272 = vpack.c.b16 %v1240, %v1240
    %v1273 = vpack.c.b16 %v1241, %v1241
    %v1274 = vpack.c.b16 %v1242, %v1242
    %v1275 = vpack.c.b16 %v1243, %v1243
    %v1276 = vpack.c.b16 %v1244, %v1244
    %v1277 = vpack.c.b16 %v1245, %v1245
    %v1278 = vpack.c.b16 %v1246, %v1246
    %v1279 = vpack.c.b16 %v1247, %v1247
    %1312 = vst [vmem:[#allocation8 + $0x4] sm:$0xf] %v1248
    %1313 = vst [vmem:[#allocation8 + $0xc] sm:$0xf] %v1249
    %1314 = vst [vmem:[#allocation8 + $0x14] sm:$0xf] %v1250
    %1315 = vst [vmem:[#allocation8 + $0x1c] sm:$0xf] %v1251
    %1316 = vst [vmem:[#allocation8 + $0x24] sm:$0xf] %v1252
    %1317 = vst [vmem:[#allocation8 + $0x2c] sm:$0xf] %v1253
    %1318 = vst [vmem:[#allocation8 + $0x34] sm:$0xf] %v1254
    %1319 = vst [vmem:[#allocation8 + $0x3c] sm:$0xf] %v1255
    %1320 = vst [vmem:[#allocation8 + $0x44] sm:$0xf] %v1256
    %1321 = vst [vmem:[#allocation8 + $0x4c] sm:$0xf] %v1257
    %1322 = vst [vmem:[#allocation8 + $0x54] sm:$0xf] %v1258
    %1323 = vst [vmem:[#allocation8 + $0x5c] sm:$0xf] %v1259
    %1324 = vst [vmem:[#allocation8 + $0x64] sm:$0xf] %v1260
    %1325 = vst [vmem:[#allocation8 + $0x6c] sm:$0xf] %v1261
    %1326 = vst [vmem:[#allocation8 + $0x74] sm:$0xf] %v1262
    %1327 = vst [vmem:[#allocation8 + $0x7c] sm:$0xf] %v1263
    %1328 = vst [vmem:[#allocation8 + $0x84] sm:$0xf] %v1264
    %1329 = vst [vmem:[#allocation8 + $0x8c] sm:$0xf] %v1265
    %1330 = vst [vmem:[#allocation8 + $0x94] sm:$0xf] %v1266
    %1331 = vst [vmem:[#allocation8 + $0x9c] sm:$0xf] %v1267
    %1332 = vst [vmem:[#allocation8 + $0xa4] sm:$0xf] %v1268
    %1333 = vst [vmem:[#allocation8 + $0xac] sm:$0xf] %v1269
    %1334 = vst [vmem:[#allocation8 + $0xb4] sm:$0xf] %v1270
    %1335 = vst [vmem:[#allocation8 + $0xbc] sm:$0xf] %v1271
    %1336 = vst [vmem:[#allocation8 + $0xc4] sm:$0xf] %v1272
    %1337 = vst [vmem:[#allocation8 + $0xcc] sm:$0xf] %v1273
    %1338 = vst [vmem:[#allocation8 + $0xd4] sm:$0xf] %v1274
    %1339 = vst [vmem:[#allocation8 + $0xdc] sm:$0xf] %v1275
    %1340 = vst [vmem:[#allocation8 + $0xe4] sm:$0xf] %v1276
    %1341 = vst [vmem:[#allocation8 + $0xec] sm:$0xf] %v1277
    %1342 = vst [vmem:[#allocation8 + $0xf4] sm:$0xf] %v1278
    %1343 = vst [vmem:[#allocation8 + $0xfc] sm:$0xf] %v1279
    // Predicated region
    $region34: #{tpu_custom_call.1} parent=1 // pred_check
      _
    $region35: #{tpu_custom_call.1} parent=1 // pred_check_branch
      %1345 = sbr.rel (0) target = $region37
    $region36: #{tpu_custom_call.1} parent=1 // pred_region
      %s1347 = ssub.s32 4096, 4096
      %1348 = vsyncadd [#allocation4], %s1347
      %s1349 = sshll.u32 [#allocation8], 4
      %s1350 = int_to_ptr.vmem [resolvable:$true] %s1349
      %1355 = dma.vmem_to_hbm [thread:$0]  %s1350, 4096, %s5, [#allocation4], 128, 128, 8
    $region37: #{tpu_custom_call.1} parent=1 // pred_fallthru
      _
    // Predicated region
    $region38: #{tpu_custom_call.1} parent=1 // pred_check
      _
    $region39: #{tpu_custom_call.1} parent=1 // pred_check_branch
      %1357 = sbr.rel (0) target = $region41
    $region40: #{tpu_custom_call.1} parent=1 // pred_region
      %1358 = dma.done [#allocation4], 4096
    $region41: #{tpu_custom_call.1} parent=1 // pred_fallthru
      _
    %1359 = vsyncpa [#allocation3], 1
    %1360 = vsyncpa [#allocation6], 1
    %1361 = vsyncpa [#allocation4], 1

</llo_original>
